<compile_context>
chip_gen: v6e
topology: v6e:2x2x1
jax: 0.10.0
libtpu: 0.0.40
codegen_flags: <defaults>
</compile_context>

<pallas_src>
import functools

import jax
import jax.numpy as jnp
from jax.experimental import pallas as pl
from jax.experimental.pallas import tpu as pltpu


LANE = 128
H1_LOGICAL, H2_LOGICAL = 400, 300      # torch module hidden sizes
H1_PAD, H2_PAD = 512, 384              # padded to lane multiples of 128


def _round_up(n, m):
    return ((n + m - 1) // m) * m


# ----------------------------------------------------------------------------- kernel
def actor_kernel(x_ref, w1_ref, b1_ref, w2_ref, b2_ref, w3_ref, b3_ref, o_ref,
                 *, u_max):
    # Three matmuls + bias + activations fused; all operands VMEM-resident.
    x = x_ref[...]
    h1 = jnp.dot(x, w1_ref[...], preferred_element_type=jnp.float32) + b1_ref[...]
    h1 = jnp.maximum(h1, 0.0)
    h2 = jnp.dot(h1, w2_ref[...], preferred_element_type=jnp.float32) + b2_ref[...]
    h2 = jnp.maximum(h2, 0.0)
    h3 = jnp.dot(h2, w3_ref[...], preferred_element_type=jnp.float32) + b3_ref[...]
    y = jnp.tanh(h3)
    if u_max != 1.0:  # static Python float -> only emit the VPU multiply if needed
        y = y * u_max
    o_ref[...] = y.astype(o_ref.dtype)


# ----------------------------------------------------------------------------- wrapper
def actor_forward_padded(x, padded_params, u_max=1.0, *, batch_tile=256):
    """x: (B, xDim) f32. padded_params: lane-padded weights (in, out) / biases (1, out).

    Returns the padded output (B_pad, U_PAD); callers slice [:B, :u_dim]."""
    w1, b1 = padded_params["w1"], padded_params["b1"]
    w2, b2 = padded_params["w2"], padded_params["b2"]
    w3, b3 = padded_params["w3"], padded_params["b3"]

    B, x_dim = x.shape
    u_pad = w3.shape[1]

    # Batch tile: multiple of 8 sublanes, capped at batch_tile (moderate for v5e).
    tb = min(batch_tile, _round_up(B, 8))
    b_pad = _round_up(B, tb)
    if b_pad != B:
        x = jnp.pad(x, ((0, b_pad - B), (0, 0)))

    kernel = functools.partial(actor_kernel, u_max=float(u_max))
    out = pl.pallas_call(
        kernel,
        out_shape=jax.ShapeDtypeStruct((b_pad, u_pad), jnp.float32),
        grid=(b_pad // tb,),
        in_specs=[
            pl.BlockSpec((tb, x_dim), lambda i: (i, 0)),       # x: tiled along batch
            pl.BlockSpec(w1.shape, lambda i: (0, 0)),          # weights: VMEM-resident
            pl.BlockSpec(b1.shape, lambda i: (0, 0)),
            pl.BlockSpec(w2.shape, lambda i: (0, 0)),
            pl.BlockSpec(b2.shape, lambda i: (0, 0)),
            pl.BlockSpec(w3.shape, lambda i: (0, 0)),
            pl.BlockSpec(b3.shape, lambda i: (0, 0)),
        ],
        out_specs=pl.BlockSpec((tb, u_pad), lambda i: (i, 0)),  # lane-dense (128) store
        compiler_params=pltpu.CompilerParams(
            dimension_semantics=("parallel",),                  # megacore split on v7x
        ),
    )(x, w1, b1, w2, b2, w3, b3)
    return out


def actor_apply(x, padded_params, u_dim, u_max=1.0, *, batch_tile=256):
    B = x.shape[0]
    out = actor_forward_padded(x, padded_params, u_max=u_max, batch_tile=batch_tile)
    return out[:B, :u_dim]


# ----------------------------------------------------------------------------- params
def init_actor_params(key, x_dim, u_dim):
    """Init mirroring the PyTorch module (logical shapes; weights stored (in, out))."""
    k1w, k1b, k2w, k2b, k3w, k3b = jax.random.split(key, 6)

    def fanin_uniform(k, fan_in, shape):
        bound = 1.0 / jnp.sqrt(jnp.float32(fan_in))
        return jax.random.uniform(k, shape, jnp.float32, -bound, bound)

    w_min, w_max = -3e-3, 3e-3
    return {
        "w1": fanin_uniform(k1w, x_dim, (x_dim, H1_LOGICAL)),
        "b1": fanin_uniform(k1b, x_dim, (1, H1_LOGICAL)),
        "w2": fanin_uniform(k2w, H1_LOGICAL, (H1_LOGICAL, H2_LOGICAL)),
        "b2": fanin_uniform(k2b, H1_LOGICAL, (1, H2_LOGICAL)),
        "w3": jax.random.uniform(k3w, (H2_LOGICAL, u_dim), jnp.float32, w_min, w_max),
        "b3": jax.random.uniform(k3b, (1, u_dim), jnp.float32, w_min, w_max),
    }


def pad_actor_params(params):
    """Zero-pad hidden dims to 512/384 and u_dim to 128 (math unchanged)."""
    def pad2(a, out_shape):
        return jnp.pad(a, ((0, out_shape[0] - a.shape[0]),
                           (0, out_shape[1] - a.shape[1])))

    x_dim = params["w1"].shape[0]
    u_dim = params["w3"].shape[1]
    u_pad = _round_up(u_dim, LANE)
    return {
        "w1": pad2(params["w1"], (x_dim, H1_PAD)),
        "b1": pad2(params["b1"], (1, H1_PAD)),
        "w2": pad2(params["w2"], (H1_PAD, H2_PAD)),
        "b2": pad2(params["b2"], (1, H2_PAD)),
        "w3": pad2(params["w3"], (H2_PAD, u_pad)),
        "b3": pad2(params["b3"], (1, u_pad)),
    }


# ----------------------------------------------------------------------------- reference
def actor_reference(x, params, u_max=1.0):
    h1 = jnp.maximum(x @ params["w1"] + params["b1"], 0.0)
    h2 = jnp.maximum(h1 @ params["w2"] + params["b2"], 0.0)
    return jnp.tanh(h2 @ params["w3"] + params["b3"]) * u_max


if __name__ == "__main__":
    key = jax.random.PRNGKey(0)
    k_params, k_x1, k_x2 = jax.random.split(key, 3)

    X_DIM, U_DIM, U_MAX = 4, 2, 1.0
    params = init_actor_params(k_params, X_DIM, U_DIM)
    padded = pad_actor_params(params)

    # Small-batch check (grid = 1 step).
    B = 8
    x = jax.random.normal(k_x1, (B, X_DIM), jnp.float32)
    y = jax.block_until_ready(actor_apply(x, padded, U_DIM, u_max=U_MAX))
    y_ref = actor_reference(x, params, u_max=U_MAX)
    assert y.shape == (B, U_DIM)
    assert jnp.allclose(y, y_ref, atol=1e-5, rtol=1e-5)

    # Batched check exercising the batch grid (grid = 2 steps) + batch padding.
    B2 = 300
    x2 = jax.random.normal(k_x2, (B2, X_DIM), jnp.float32)
    y2 = jax.block_until_ready(actor_apply(x2, padded, U_DIM, u_max=U_MAX))
    y2_ref = actor_reference(x2, params, u_max=U_MAX)
    assert y2.shape == (B2, U_DIM)
    assert jnp.allclose(y2, y2_ref, atol=1e-5, rtol=1e-5)

    print("KERNEL_OK")
</pallas_src>

<mosaic_0001>
module attributes {stable_mosaic.version = 11 : i64} {
  func.func @actor_kernel(%arg0: i32, %arg1: memref<8x4xf32, #tpu.memory_space<vmem>>, %arg2: memref<4x512xf32, #tpu.memory_space<vmem>>, %arg3: memref<1x512xf32, #tpu.memory_space<vmem>>, %arg4: memref<512x384xf32, #tpu.memory_space<vmem>>, %arg5: memref<1x384xf32, #tpu.memory_space<vmem>>, %arg6: memref<384x128xf32, #tpu.memory_space<vmem>>, %arg7: memref<1x128xf32, #tpu.memory_space<vmem>>, %arg8: memref<8x128xf32, #tpu.memory_space<vmem>>) attributes {dimension_semantics = [#tpu.dimension_semantics<parallel>], iteration_bounds = array<i64: 1>, scalar_prefetch = 0 : i64, scratch_operands = 0 : i64, tpu.core_type = #tpu.core_type<tc>, window_params = [{transform_indices = @transform_0, window_bounds = array<i64: 8, 4>}, {pipeline_mode = #tpu.pipeline_mode<synchronous>, transform_indices = @transform_1, window_bounds = array<i64: 4, 512>}, {pipeline_mode = #tpu.pipeline_mode<synchronous>, transform_indices = @transform_2, window_bounds = array<i64: 1, 512>}, {pipeline_mode = #tpu.pipeline_mode<synchronous>, transform_indices = @transform_3, window_bounds = array<i64: 512, 384>}, {pipeline_mode = #tpu.pipeline_mode<synchronous>, transform_indices = @transform_4, window_bounds = array<i64: 1, 384>}, {pipeline_mode = #tpu.pipeline_mode<synchronous>, transform_indices = @transform_5, window_bounds = array<i64: 384, 128>}, {pipeline_mode = #tpu.pipeline_mode<synchronous>, transform_indices = @transform_6, window_bounds = array<i64: 1, 128>}, {transform_indices = @transform_7, window_bounds = array<i64: 8, 128>}]} {
    %c0 = arith.constant 0 : index
    %c0_0 = arith.constant 0 : index
    %0 = vector.load %arg1[%c0, %c0_0] : memref<8x4xf32, #tpu.memory_space<vmem>>, vector<8x4xf32>
    %c0_1 = arith.constant 0 : index
    %c0_2 = arith.constant 0 : index
    %1 = vector.load %arg2[%c0_1, %c0_2] : memref<4x512xf32, #tpu.memory_space<vmem>>, vector<4x512xf32>
    %cst = arith.constant dense<0.000000e+00> : vector<8x512xf32>
    %2 = tpu.matmul %0, %1, %cst {dimension_numbers = #tpu.dot_dimension_numbers<[1], [0], [0], [1], [0, 0, 1, 1], [], []>} : vector<8x4xf32>, vector<4x512xf32>, vector<8x512xf32> -> vector<8x512xf32>
    %c0_3 = arith.constant 0 : index
    %c0_4 = arith.constant 0 : index
    %3 = vector.load %arg3[%c0_3, %c0_4] : memref<1x512xf32, #tpu.memory_space<vmem>>, vector<1x512xf32>
    %4 = vector.broadcast %3 : vector<1x512xf32> to vector<8x512xf32>
    %5 = arith.addf %2, %4 : vector<8x512xf32>
    %cst_5 = arith.constant 0.000000e+00 : f32
    %6 = vector.broadcast %cst_5 : f32 to vector<8x512xf32>
    %7 = arith.maximumf %5, %6 : vector<8x512xf32>
    %c0_6 = arith.constant 0 : index
    %c0_7 = arith.constant 0 : index
    %8 = vector.load %arg4[%c0_6, %c0_7] : memref<512x384xf32, #tpu.memory_space<vmem>>, vector<512x384xf32>
    %cst_8 = arith.constant dense<0.000000e+00> : vector<8x384xf32>
    %9 = tpu.matmul %7, %8, %cst_8 {dimension_numbers = #tpu.dot_dimension_numbers<[1], [0], [0], [1], [0, 0, 1, 1], [], []>} : vector<8x512xf32>, vector<512x384xf32>, vector<8x384xf32> -> vector<8x384xf32>
    %c0_9 = arith.constant 0 : index
    %c0_10 = arith.constant 0 : index
    %10 = vector.load %arg5[%c0_9, %c0_10] : memref<1x384xf32, #tpu.memory_space<vmem>>, vector<1x384xf32>
    %11 = vector.broadcast %10 : vector<1x384xf32> to vector<8x384xf32>
    %12 = arith.addf %9, %11 : vector<8x384xf32>
    %cst_11 = arith.constant 0.000000e+00 : f32
    %13 = vector.broadcast %cst_11 : f32 to vector<8x384xf32>
    %14 = arith.maximumf %12, %13 : vector<8x384xf32>
    %c0_12 = arith.constant 0 : index
    %c0_13 = arith.constant 0 : index
    %15 = vector.load %arg6[%c0_12, %c0_13] : memref<384x128xf32, #tpu.memory_space<vmem>>, vector<384x128xf32>
    %cst_14 = arith.constant dense<0.000000e+00> : vector<8x128xf32>
    %16 = tpu.matmul %14, %15, %cst_14 {dimension_numbers = #tpu.dot_dimension_numbers<[1], [0], [0], [1], [0, 0, 1, 1], [], []>} : vector<8x384xf32>, vector<384x128xf32>, vector<8x128xf32> -> vector<8x128xf32>
    %c0_15 = arith.constant 0 : index
    %c0_16 = arith.constant 0 : index
    %17 = vector.load %arg7[%c0_15, %c0_16] : memref<1x128xf32, #tpu.memory_space<vmem>>, vector<1x128xf32>
    %18 = vector.broadcast %17 : vector<1x128xf32> to vector<8x128xf32>
    %19 = arith.addf %16, %18 : vector<8x128xf32>
    %20 = math.tanh %19 : vector<8x128xf32>
    %c0_17 = arith.constant 0 : index
    %c0_18 = arith.constant 0 : index
    %21 = vector.load %arg8[%c0_17, %c0_18] : memref<8x128xf32, #tpu.memory_space<vmem>>, vector<8x128xf32>
    tpu.vector_store %arg8[%c0_17, %c0_18], %20 {strides = array<i32>} : memref<8x128xf32, #tpu.memory_space<vmem>>, vector<8x128xf32>,
    return
  }
  func.func @transform_0(%arg0: i32) -> (i32, i32) {
    %c0_i32 = arith.constant 0 : i32
    %c0_i32_0 = arith.constant 0 : i32
    return %arg0, %c0_i32 : i32, i32
  }
  func.func @transform_1(%arg0: i32) -> (i32, i32) {
    %c0_i32 = arith.constant 0 : i32
    %c0_i32_0 = arith.constant 0 : i32
    %c0_i32_1 = arith.constant 0 : i32
    return %c0_i32, %c0_i32_0 : i32, i32
  }
  func.func @transform_2(%arg0: i32) -> (i32, i32) {
    %c0_i32 = arith.constant 0 : i32
    %c0_i32_0 = arith.constant 0 : i32
    %c0_i32_1 = arith.constant 0 : i32
    return %c0_i32, %c0_i32_0 : i32, i32
  }
  func.func @transform_3(%arg0: i32) -> (i32, i32) {
    %c0_i32 = arith.constant 0 : i32
    %c0_i32_0 = arith.constant 0 : i32
    %c0_i32_1 = arith.constant 0 : i32
    return %c0_i32, %c0_i32_0 : i32, i32
  }
  func.func @transform_4(%arg0: i32) -> (i32, i32) {
    %c0_i32 = arith.constant 0 : i32
    %c0_i32_0 = arith.constant 0 : i32
    %c0_i32_1 = arith.constant 0 : i32
    return %c0_i32, %c0_i32_0 : i32, i32
  }
  func.func @transform_5(%arg0: i32) -> (i32, i32) {
    %c0_i32 = arith.constant 0 : i32
    %c0_i32_0 = arith.constant 0 : i32
    %c0_i32_1 = arith.constant 0 : i32
    return %c0_i32, %c0_i32_0 : i32, i32
  }
  func.func @transform_6(%arg0: i32) -> (i32, i32) {
    %c0_i32 = arith.constant 0 : i32
    %c0_i32_0 = arith.constant 0 : i32
    %c0_i32_1 = arith.constant 0 : i32
    return %c0_i32, %c0_i32_0 : i32, i32
  }
  func.func @transform_7(%arg0: i32) -> (i32, i32) {
    %c0_i32 = arith.constant 0 : i32
    %c0_i32_0 = arith.constant 0 : i32
    return %arg0, %c0_i32 : i32, i32
  }
}

</mosaic_0001>

<llo_original>
// kernel: tpu_custom_call.1
$region0: #{tpu_custom_call.1}
  #allocation0 [shape = 'u32[]', space=smem, size = 0x4, offset = 0x4, fixed_abs, tag = 'smem constant byte address 0x4 - core index']
  #allocation1 [shape = 'u32[144,128]{1,0:T(1,128)}', space=vmem, size = 0x12000, scoped, tag = 'internal scratch']
  %s0 = inlined_call_operand.vmem [shape: f32[8,4], index: 0, kind: input, shape index: {}]
  %s1 = inlined_call_operand.hbm [shape: f32[4,512], index: 1, kind: input, shape index: {}]
  %s2 = inlined_call_operand.vmem [shape: f32[1,512], index: 2, kind: input, shape index: {}]
  %s3 = inlined_call_operand.hbm [shape: f32[512,384], index: 3, kind: input, shape index: {}]
  %s4 = inlined_call_operand.vmem [shape: f32[1,384], index: 4, kind: input, shape index: {}]
  %s5 = inlined_call_operand.hbm [shape: f32[384,128], index: 5, kind: input, shape index: {}]
  %s6 = inlined_call_operand.vmem [shape: f32[1,128], index: 6, kind: input, shape index: {}]
  %s7 = inlined_call_operand.hbm [shape: f32[8,128], index: 7, kind: output, shape index: {}]
  %s8 = sld [smem:[#allocation0]]
  $region50: #{tpu_custom_call.1} parent=0
    _
  %s10 = ssub.s32 1, %s8
  %s11 = scalar_select 0, %s10, %s8
  $region1: #{tpu_custom_call.1} parent=0
    #allocation2 [shape = 'u8[8192]{0}', space=vmem, size = 0x2000, scoped, tag = 'input window, operand 1, single buffered']
    #allocation3 [shape = 's32[1]{0}', space=sflag, size = 0x4, scoped, tag = 'scoped memory for tpu_custom_call.1']
    #allocation4 [shape = 's32[1]{0}', space=sflag, size = 0x4, scoped, tag = 'scoped memory for tpu_custom_call.1']
    #allocation5 [shape = 'u8[786432]{0}', space=vmem, size = 0xc0000, scoped, tag = 'input window, operand 3, single buffered']
    #allocation6 [shape = 's32[1]{0}', space=sflag, size = 0x4, scoped, tag = 'scoped memory for tpu_custom_call.1']
    #allocation7 [shape = 'u8[196608]{0}', space=vmem, size = 0x30000, scoped, tag = 'input window, operand 5, single buffered']
    #allocation8 [shape = 'u8[4096]{0}', space=vmem, size = 0x1000, scoped, tag = 'output window, operand 0, single buffered']
    %12 = vsyncpa [#allocation3], 0
    %13 = vsyncpa [#allocation6], 0
    %14 = vsyncpa [#allocation4], 0
    // Predicated region
    $region2: #{tpu_custom_call.1} parent=1 // pred_check
      _
    $region3: #{tpu_custom_call.1} parent=1 // pred_check_branch
      %16 = sbr.rel (0) target = $region5
    $region4: #{tpu_custom_call.1} parent=1 // pred_region
      _
    $region5: #{tpu_custom_call.1} parent=1 // pred_fallthru
      _
    // Predicated region
    $region6: #{tpu_custom_call.1} parent=1 // pred_check
      _
    $region7: #{tpu_custom_call.1} parent=1 // pred_check_branch
      %18 = sbr.rel (0) target = $region9
    $region8: #{tpu_custom_call.1} parent=1 // pred_region
      %s20 = ssub.s32 256, 256
      %21 = vsyncadd [#allocation3], %s20
      %s23 = sshll.u32 [#allocation2], 4
      %s24 = int_to_ptr.vmem [resolvable:$true] %s23
      %26 = dma.hbm_to_vmem [thread:$0]  %s1, 256, %s24, [#allocation3]
    $region9: #{tpu_custom_call.1} parent=1 // pred_fallthru
      _
    // Predicated region
    $region10: #{tpu_custom_call.1} parent=1 // pred_check
      _
    $region11: #{tpu_custom_call.1} parent=1 // pred_check_branch
      %28 = sbr.rel (0) target = $region13
    $region12: #{tpu_custom_call.1} parent=1 // pred_region
      _
    $region13: #{tpu_custom_call.1} parent=1 // pred_fallthru
      _
    // Predicated region
    $region14: #{tpu_custom_call.1} parent=1 // pred_check
      _
    $region15: #{tpu_custom_call.1} parent=1 // pred_check_branch
      %30 = sbr.rel (0) target = $region17
    $region16: #{tpu_custom_call.1} parent=1 // pred_region
      %s32 = ssub.s32 24576, 24576
      %33 = vsyncadd [#allocation6], %s32
      %s34 = sshll.u32 [#allocation5], 4
      %s35 = int_to_ptr.vmem [resolvable:$true] %s34
      %40 = dma.hbm_to_vmem [thread:$0]  %s3, 24576, %s35, [#allocation6], 384, 384, 24
    $region17: #{tpu_custom_call.1} parent=1 // pred_fallthru
      _
    // Predicated region
    $region18: #{tpu_custom_call.1} parent=1 // pred_check
      _
    $region19: #{tpu_custom_call.1} parent=1 // pred_check_branch
      %42 = sbr.rel (0) target = $region21
    $region20: #{tpu_custom_call.1} parent=1 // pred_region
      _
    $region21: #{tpu_custom_call.1} parent=1 // pred_fallthru
      _
    // Predicated region
    $region22: #{tpu_custom_call.1} parent=1 // pred_check
      _
    $region23: #{tpu_custom_call.1} parent=1 // pred_check_branch
      %44 = sbr.rel (0) target = $region25
    $region24: #{tpu_custom_call.1} parent=1 // pred_region
      %s46 = ssub.s32 6144, 6144
      %47 = vsyncadd [#allocation6], %s46
      %s48 = sshll.u32 [#allocation7], 4
      %s49 = int_to_ptr.vmem [resolvable:$true] %s48
      %54 = dma.hbm_to_vmem [thread:$0]  %s5, 6144, %s49, [#allocation6], 128, 128, 8
    $region25: #{tpu_custom_call.1} parent=1 // pred_fallthru
      _
    // Predicated region
    $region26: #{tpu_custom_call.1} parent=1 // pred_check
      _
    $region27: #{tpu_custom_call.1} parent=1 // pred_check_branch
      %56 = sbr.rel (0) target = $region29
    $region28: #{tpu_custom_call.1} parent=1 // pred_region
      _
    $region29: #{tpu_custom_call.1} parent=1 // pred_fallthru
      _
    // Predicated region
    $region30: #{tpu_custom_call.1} parent=1 // pred_check
      _
    $region31: #{tpu_custom_call.1} parent=1 // pred_check_branch
      %58 = sbr.rel (0) target = $region33
    $region32: #{tpu_custom_call.1} parent=1 // pred_region
      %59 = dma.done [#allocation3], 256
    $region33: #{tpu_custom_call.1} parent=1 // pred_fallthru
      _
    // Predicated region
    $region34: #{tpu_custom_call.1} parent=1 // pred_check
      _
    $region35: #{tpu_custom_call.1} parent=1 // pred_check_branch
      %61 = sbr.rel (0) target = $region37
    $region36: #{tpu_custom_call.1} parent=1 // pred_region
      %62 = dma.done [#allocation6], 24576
    $region37: #{tpu_custom_call.1} parent=1 // pred_fallthru
      _
    // Predicated region
    $region38: #{tpu_custom_call.1} parent=1 // pred_check
      _
    $region39: #{tpu_custom_call.1} parent=1 // pred_check_branch
      %64 = sbr.rel (0) target = $region41
    $region40: #{tpu_custom_call.1} parent=1 // pred_region
      %65 = dma.done [#allocation6], 6144
    $region41: #{tpu_custom_call.1} parent=1 // pred_fallthru
      _
    %v66 = vld [vmem:[%s0] sm:$0xff]
    %v67 = vld [vmem:[#allocation2] sm:$0xff]
    %v68 = vld [vmem:[#allocation2 + $0x8] sm:$0xff]
    %v69 = vld [vmem:[%s2] sm:$0xf]
    %v71 = vlaneseq
    %v72 = vshrl.u32 %v71, 7
    %v73 = vsub.s32 0, %v72
    %v74 = vrot.slane %v69, %v73
    %v75 = vlaneseq
    %v76 = vshrl.u32 %v75, 7
    %v77 = vsub.s32 1, %v76
    %v78 = vrot.slane %v69, %v77
    %v79 = vlaneseq
    %v80 = vshrl.u32 %v79, 7
    %v81 = vsub.s32 2, %v80
    %v82 = vrot.slane %v69, %v81
    %v83 = vlaneseq
    %v84 = vshrl.u32 %v83, 7
    %v85 = vsub.s32 3, %v84
    %v86 = vrot.slane %v69, %v85
    %v93 = vcombine.high %v67, %v67
    %v94 = vcombine.high %v68, %v68
    %vm95 = vcmask 31744
    %v97 = vsel %vm95, %v66, 0
    %vm99 = vcmask 1043456
    %v100 = vsel %vm99, %v67, 0
    %v102 = vsel %vm99, %v93, 0
    %v104 = vsel %vm99, %v68, 0
    %v106 = vsel %vm99, %v94, 0
    %108 = vmatprep.subr.mxu0 0.0
    %109 = vmatpush1.msra.mxu0 0.0
    %110 = vmatprep.subr.mxu0 0.0
    %111 = vmatpush1.msra.mxu0 0.0
    %112 = vmatprep.subr.mxu0 0.0
    %113 = vmatpush1.msra.mxu0 0.0
    %114 = vmatprep.subr.mxu0 0.0
    %115 = vmatpush1.msra.mxu0 0.0
    %116 = vmatprep.subr.mxu0 0.0
    %117 = vmatpush1.msra.mxu0 0.0
    %118 = vmatprep.subr.mxu0 0.0
    %119 = vmatpush1.msra.mxu0 0.0
    %120 = vmatprep.subr.mxu0 0.0
    %121 = vmatpush1.msra.mxu0 0.0
    %122 = vmatprep.subr.mxu0 0.0
    %123 = vmatpush1.msra.mxu0 0.0
    %124 = vmatprep.subr.mxu0 0.0
    %125 = vmatpush1.msra.mxu0 0.0
    %126 = vmatprep.subr.mxu0 0.0
    %127 = vmatpush1.msra.mxu0 0.0
    %128 = vmatprep.subr.mxu0 0.0
    %129 = vmatpush1.msra.mxu0 0.0
    %130 = vmatprep.subr.mxu0 0.0
    %131 = vmatpush1.msra.mxu0 0.0
    %132 = vmatprep.subr.mxu0 0.0
    %133 = vmatpush1.msra.mxu0 0.0
    %134 = vmatprep.subr.mxu0 0.0
    %135 = vmatpush1.msra.mxu0 0.0
    %136 = vmatprep.subr.mxu0 0.0
    %137 = vmatpush1.msra.mxu0 0.0
    %138 = vmatprep.subr.mxu0 %v102
    %139 = vmatpush1.msra.mxu0 %v100
    %140 = vmatprep.subr.mxu0 0.0
    %141 = vmatpush2.msra.mxu0 0.0
    %142 = vmatprep.subr.mxu0 0.0
    %143 = vmatpush2.msra.mxu0 0.0
    %144 = vmatprep.subr.mxu0 0.0
    %145 = vmatpush2.msra.mxu0 0.0
    %146 = vmatprep.subr.mxu0 0.0
    %147 = vmatpush2.msra.mxu0 0.0
    %148 = vmatprep.subr.mxu0 0.0
    %149 = vmatpush2.msra.mxu0 0.0
    %150 = vmatprep.subr.mxu0 0.0
    %151 = vmatpush2.msra.mxu0 0.0
    %152 = vmatprep.subr.mxu0 0.0
    %153 = vmatpush2.msra.mxu0 0.0
    %154 = vmatprep.subr.mxu0 0.0
    %155 = vmatpush2.msra.mxu0 0.0
    %156 = vmatprep.subr.mxu0 0.0
    %157 = vmatpush2.msra.mxu0 0.0
    %158 = vmatprep.subr.mxu0 0.0
    %159 = vmatpush2.msra.mxu0 0.0
    %160 = vmatprep.subr.mxu0 0.0
    %161 = vmatpush2.msra.mxu0 0.0
    %162 = vmatprep.subr.mxu0 0.0
    %163 = vmatpush2.msra.mxu0 0.0
    %164 = vmatprep.subr.mxu0 0.0
    %165 = vmatpush2.msra.mxu0 0.0
    %166 = vmatprep.subr.mxu0 0.0
    %167 = vmatpush2.msra.mxu0 0.0
    %168 = vmatprep.subr.mxu0 0.0
    %169 = vmatpush2.msra.mxu0 0.0
    %170 = vmatprep.subr.mxu0 0.0
    %171 = vmatpush2.msra.mxu0 0.0
    %172 = vmatprep.mubr.f32.mxu0 0.0
    %173 = vmatmul.mubr.f32.gmra.mxu0 %v97
    %v174 = vpop.f32.mrf.mxu0
    %v175 = vadd.f32 %v74, %v174
    %v176 = vpop.f32.mrf.mxu0
    %v177 = vadd.f32 %v78, %v176
    %178 = vdwg.mxu0
    %179 = vmatprep.subr.mxu0 0.0
    %180 = vmatpush1.msra.mxu0 0.0
    %181 = vmatprep.subr.mxu0 0.0
    %182 = vmatpush1.msra.mxu0 0.0
    %183 = vmatprep.subr.mxu0 0.0
    %184 = vmatpush1.msra.mxu0 0.0
    %185 = vmatprep.subr.mxu0 0.0
    %186 = vmatpush1.msra.mxu0 0.0
    %187 = vmatprep.subr.mxu0 0.0
    %188 = vmatpush1.msra.mxu0 0.0
    %189 = vmatprep.subr.mxu0 0.0
    %190 = vmatpush1.msra.mxu0 0.0
    %191 = vmatprep.subr.mxu0 0.0
    %192 = vmatpush1.msra.mxu0 0.0
    %193 = vmatprep.subr.mxu0 0.0
    %194 = vmatpush1.msra.mxu0 0.0
    %195 = vmatprep.subr.mxu0 0.0
    %196 = vmatpush1.msra.mxu0 0.0
    %197 = vmatprep.subr.mxu0 0.0
    %198 = vmatpush1.msra.mxu0 0.0
    %199 = vmatprep.subr.mxu0 0.0
    %200 = vmatpush1.msra.mxu0 0.0
    %201 = vmatprep.subr.mxu0 0.0
    %202 = vmatpush1.msra.mxu0 0.0
    %203 = vmatprep.subr.mxu0 0.0
    %204 = vmatpush1.msra.mxu0 0.0
    %205 = vmatprep.subr.mxu0 0.0
    %206 = vmatpush1.msra.mxu0 0.0
    %207 = vmatprep.subr.mxu0 0.0
    %208 = vmatpush1.msra.mxu0 0.0
    %209 = vmatprep.subr.mxu0 %v106
    %210 = vmatpush1.msra.mxu0 %v104
    %211 = vmatprep.subr.mxu0 0.0
    %212 = vmatpush2.msra.mxu0 0.0
    %213 = vmatprep.subr.mxu0 0.0
    %214 = vmatpush2.msra.mxu0 0.0
    %215 = vmatprep.subr.mxu0 0.0
    %216 = vmatpush2.msra.mxu0 0.0
    %217 = vmatprep.subr.mxu0 0.0
    %218 = vmatpush2.msra.mxu0 0.0
    %219 = vmatprep.subr.mxu0 0.0
    %220 = vmatpush2.msra.mxu0 0.0
    %221 = vmatprep.subr.mxu0 0.0
    %222 = vmatpush2.msra.mxu0 0.0
    %223 = vmatprep.subr.mxu0 0.0
    %224 = vmatpush2.msra.mxu0 0.0
    %225 = vmatprep.subr.mxu0 0.0
    %226 = vmatpush2.msra.mxu0 0.0
    %227 = vmatprep.subr.mxu0 0.0
    %228 = vmatpush2.msra.mxu0 0.0
    %229 = vmatprep.subr.mxu0 0.0
    %230 = vmatpush2.msra.mxu0 0.0
    %231 = vmatprep.subr.mxu0 0.0
    %232 = vmatpush2.msra.mxu0 0.0
    %233 = vmatprep.subr.mxu0 0.0
    %234 = vmatpush2.msra.mxu0 0.0
    %235 = vmatprep.subr.mxu0 0.0
    %236 = vmatpush2.msra.mxu0 0.0
    %237 = vmatprep.subr.mxu0 0.0
    %238 = vmatpush2.msra.mxu0 0.0
    %239 = vmatprep.subr.mxu0 0.0
    %240 = vmatpush2.msra.mxu0 0.0
    %241 = vmatprep.subr.mxu0 0.0
    %242 = vmatpush2.msra.mxu0 0.0
    %243 = vmatprep.mubr.f32.mxu0 0.0
    %244 = vmatmul.mubr.f32.gmra.mxu0 %v97
    %v245 = vpop.f32.mrf.mxu0
    %v246 = vadd.f32 %v82, %v245
    %v247 = vpop.f32.mrf.mxu0
    %v248 = vadd.f32 %v86, %v247
    %249 = vdwg.mxu0
    %v250 = vmax.f32 %v175, 0.0
    %v251 = vmax.f32 %v177, 0.0
    %v252 = vmax.f32 %v246, 0.0
    %v253 = vmax.f32 %v248, 0.0
    %v254 = vld [vmem:[#allocation5] sm:$0xff]
    %v255 = vld [vmem:[#allocation5 + $0x8] sm:$0xff]
    %v256 = vld [vmem:[#allocation5 + $0x10] sm:$0xff]
    %v257 = vld [vmem:[#allocation5 + $0x18] sm:$0xff]
    %v258 = vld [vmem:[#allocation5 + $0x20] sm:$0xff]
    %v259 = vld [vmem:[#allocation5 + $0x28] sm:$0xff]
    %v260 = vld [vmem:[#allocation5 + $0x30] sm:$0xff]
    %v261 = vld [vmem:[#allocation5 + $0x38] sm:$0xff]
    %v262 = vld [vmem:[#allocation5 + $0x40] sm:$0xff]
    %v263 = vld [vmem:[#allocation5 + $0x48] sm:$0xff]
    %v264 = vld [vmem:[#allocation5 + $0x50] sm:$0xff]
    %v265 = vld [vmem:[#allocation5 + $0x58] sm:$0xff]
    %v266 = vld [vmem:[#allocation5 + $0x60] sm:$0xff]
    %v267 = vld [vmem:[#allocation5 + $0x68] sm:$0xff]
    %v268 = vld [vmem:[#allocation5 + $0x70] sm:$0xff]
    %v269 = vld [vmem:[#allocation5 + $0x78] sm:$0xff]
    %v270 = vld [vmem:[#allocation5 + $0x80] sm:$0xff]
    %v271 = vld [vmem:[#allocation5 + $0x88] sm:$0xff]
    %v272 = vld [vmem:[#allocation5 + $0x90] sm:$0xff]
    %v273 = vld [vmem:[#allocation5 + $0x98] sm:$0xff]
    %v274 = vld [vmem:[#allocation5 + $0xa0] sm:$0xff]
    %v275 = vld [vmem:[#allocation5 + $0xa8] sm:$0xff]
    %v276 = vld [vmem:[#allocation5 + $0xb0] sm:$0xff]
    %v277 = vld [vmem:[#allocation5 + $0xb8] sm:$0xff]
    %v278 = vld [vmem:[#allocation5 + $0xc0] sm:$0xff]
    %v279 = vld [vmem:[#allocation5 + $0xc8] sm:$0xff]
    %v280 = vld [vmem:[#allocation5 + $0xd0] sm:$0xff]
    %v281 = vld [vmem:[#allocation5 + $0xd8] sm:$0xff]
    %v282 = vld [vmem:[#allocation5 + $0xe0] sm:$0xff]
    %v283 = vld [vmem:[#allocation5 + $0xe8] sm:$0xff]
    %v284 = vld [vmem:[#allocation5 + $0xf0] sm:$0xff]
    %v285 = vld [vmem:[#allocation5 + $0xf8] sm:$0xff]
    %v286 = vld [vmem:[#allocation5 + $0x100] sm:$0xff]
    %v287 = vld [vmem:[#allocation5 + $0x108] sm:$0xff]
    %v288 = vld [vmem:[#allocation5 + $0x110] sm:$0xff]
    %v289 = vld [vmem:[#allocation5 + $0x118] sm:$0xff]
    %v290 = vld [vmem:[#allocation5 + $0x120] sm:$0xff]
    %v291 = vld [vmem:[#allocation5 + $0x128] sm:$0xff]
    %v292 = vld [vmem:[#allocation5 + $0x130] sm:$0xff]
    %v293 = vld [vmem:[#allocation5 + $0x138] sm:$0xff]
    %v294 = vld [vmem:[#allocation5 + $0x140] sm:$0xff]
    %v295 = vld [vmem:[#allocation5 + $0x148] sm:$0xff]
    %v296 = vld [vmem:[#allocation5 + $0x150] sm:$0xff]
    %v297 = vld [vmem:[#allocation5 + $0x158] sm:$0xff]
    %v298 = vld [vmem:[#allocation5 + $0x160] sm:$0xff]
    %v299 = vld [vmem:[#allocation5 + $0x168] sm:$0xff]
    %v300 = vld [vmem:[#allocation5 + $0x170] sm:$0xff]
    %v301 = vld [vmem:[#allocation5 + $0x178] sm:$0xff]
    %v302 = vld [vmem:[#allocation5 + $0x180] sm:$0xff]
    %v303 = vld [vmem:[#allocation5 + $0x188] sm:$0xff]
    %v304 = vld [vmem:[#allocation5 + $0x190] sm:$0xff]
    %v305 = vld [vmem:[#allocation5 + $0x198] sm:$0xff]
    %v306 = vld [vmem:[#allocation5 + $0x1a0] sm:$0xff]
    %v307 = vld [vmem:[#allocation5 + $0x1a8] sm:$0xff]
    %v308 = vld [vmem:[#allocation5 + $0x1b0] sm:$0xff]
    %v309 = vld [vmem:[#allocation5 + $0x1b8] sm:$0xff]
    %v310 = vld [vmem:[#allocation5 + $0x1c0] sm:$0xff]
    %v311 = vld [vmem:[#allocation5 + $0x1c8] sm:$0xff]
    %v312 = vld [vmem:[#allocation5 + $0x1d0] sm:$0xff]
    %v313 = vld [vmem:[#allocation5 + $0x1d8] sm:$0xff]
    %v314 = vld [vmem:[#allocation5 + $0x1e0] sm:$0xff]
    %v315 = vld [vmem:[#allocation5 + $0x1e8] sm:$0xff]
    %v316 = vld [vmem:[#allocation5 + $0x1f0] sm:$0xff]
    %v317 = vld [vmem:[#allocation5 + $0x1f8] sm:$0xff]
    %v318 = vld [vmem:[#allocation5 + $0x200] sm:$0xff]
    %v319 = vld [vmem:[#allocation5 + $0x208] sm:$0xff]
    %v320 = vld [vmem:[#allocation5 + $0x210] sm:$0xff]
    %v321 = vld [vmem:[#allocation5 + $0x218] sm:$0xff]
    %v322 = vld [vmem:[#allocation5 + $0x220] sm:$0xff]
    %v323 = vld [vmem:[#allocation5 + $0x228] sm:$0xff]
    %v324 = vld [vmem:[#allocation5 + $0x230] sm:$0xff]
    %v325 = vld [vmem:[#allocation5 + $0x238] sm:$0xff]
    %v326 = vld [vmem:[#allocation5 + $0x240] sm:$0xff]
    %v327 = vld [vmem:[#allocation5 + $0x248] sm:$0xff]
    %v328 = vld [vmem:[#allocation5 + $0x250] sm:$0xff]
    %v329 = vld [vmem:[#allocation5 + $0x258] sm:$0xff]
    %v330 = vld [vmem:[#allocation5 + $0x260] sm:$0xff]
    %v331 = vld [vmem:[#allocation5 + $0x268] sm:$0xff]
    %v332 = vld [vmem:[#allocation5 + $0x270] sm:$0xff]
    %v333 = vld [vmem:[#allocation5 + $0x278] sm:$0xff]
    %v334 = vld [vmem:[#allocation5 + $0x280] sm:$0xff]
    %v335 = vld [vmem:[#allocation5 + $0x288] sm:$0xff]
    %v336 = vld [vmem:[#allocation5 + $0x290] sm:$0xff]
    %v337 = vld [vmem:[#allocation5 + $0x298] sm:$0xff]
    %v338 = vld [vmem:[#allocation5 + $0x2a0] sm:$0xff]
    %v339 = vld [vmem:[#allocation5 + $0x2a8] sm:$0xff]
    %v340 = vld [vmem:[#allocation5 + $0x2b0] sm:$0xff]
    %v341 = vld [vmem:[#allocation5 + $0x2b8] sm:$0xff]
    %v342 = vld [vmem:[#allocation5 + $0x2c0] sm:$0xff]
    %v343 = vld [vmem:[#allocation5 + $0x2c8] sm:$0xff]
    %v344 = vld [vmem:[#allocation5 + $0x2d0] sm:$0xff]
    %v345 = vld [vmem:[#allocation5 + $0x2d8] sm:$0xff]
    %v346 = vld [vmem:[#allocation5 + $0x2e0] sm:$0xff]
    %v347 = vld [vmem:[#allocation5 + $0x2e8] sm:$0xff]
    %v348 = vld [vmem:[#allocation5 + $0x2f0] sm:$0xff]
    %v349 = vld [vmem:[#allocation5 + $0x2f8] sm:$0xff]
    %v350 = vld [vmem:[#allocation5 + $0x300] sm:$0xff]
    %v351 = vld [vmem:[#allocation5 + $0x308] sm:$0xff]
    %v352 = vld [vmem:[#allocation5 + $0x310] sm:$0xff]
    %v353 = vld [vmem:[#allocation5 + $0x318] sm:$0xff]
    %v354 = vld [vmem:[#allocation5 + $0x320] sm:$0xff]
    %v355 = vld [vmem:[#allocation5 + $0x328] sm:$0xff]
    %v356 = vld [vmem:[#allocation5 + $0x330] sm:$0xff]
    %v357 = vld [vmem:[#allocation5 + $0x338] sm:$0xff]
    %v358 = vld [vmem:[#allocation5 + $0x340] sm:$0xff]
    %v359 = vld [vmem:[#allocation5 + $0x348] sm:$0xff]
    %v360 = vld [vmem:[#allocation5 + $0x350] sm:$0xff]
    %v361 = vld [vmem:[#allocation5 + $0x358] sm:$0xff]
    %v362 = vld [vmem:[#allocation5 + $0x360] sm:$0xff]
    %v363 = vld [vmem:[#allocation5 + $0x368] sm:$0xff]
    %v364 = vld [vmem:[#allocation5 + $0x370] sm:$0xff]
    %v365 = vld [vmem:[#allocation5 + $0x378] sm:$0xff]
    %v366 = vld [vmem:[#allocation5 + $0x380] sm:$0xff]
    %v367 = vld [vmem:[#allocation5 + $0x388] sm:$0xff]
    %v368 = vld [vmem:[#allocation5 + $0x390] sm:$0xff]
    %v369 = vld [vmem:[#allocation5 + $0x398] sm:$0xff]
    %v370 = vld [vmem:[#allocation5 + $0x3a0] sm:$0xff]
    %v371 = vld [vmem:[#allocation5 + $0x3a8] sm:$0xff]
    %v372 = vld [vmem:[#allocation5 + $0x3b0] sm:$0xff]
    %v373 = vld [vmem:[#allocation5 + $0x3b8] sm:$0xff]
    %v374 = vld [vmem:[#allocation5 + $0x3c0] sm:$0xff]
    %v375 = vld [vmem:[#allocation5 + $0x3c8] sm:$0xff]
    %v376 = vld [vmem:[#allocation5 + $0x3d0] sm:$0xff]
    %v377 = vld [vmem:[#allocation5 + $0x3d8] sm:$0xff]
    %v378 = vld [vmem:[#allocation5 + $0x3e0] sm:$0xff]
    %v379 = vld [vmem:[#allocation5 + $0x3e8] sm:$0xff]
    %v380 = vld [vmem:[#allocation5 + $0x3f0] sm:$0xff]
    %v381 = vld [vmem:[#allocation5 + $0x3f8] sm:$0xff]
    %v382 = vld [vmem:[#allocation5 + $0x400] sm:$0xff]
    %v383 = vld [vmem:[#allocation5 + $0x408] sm:$0xff]
    %v384 = vld [vmem:[#allocation5 + $0x410] sm:$0xff]
    %v385 = vld [vmem:[#allocation5 + $0x418] sm:$0xff]
    %v386 = vld [vmem:[#allocation5 + $0x420] sm:$0xff]
    %v387 = vld [vmem:[#allocation5 + $0x428] sm:$0xff]
    %v388 = vld [vmem:[#allocation5 + $0x430] sm:$0xff]
    %v389 = vld [vmem:[#allocation5 + $0x438] sm:$0xff]
    %v390 = vld [vmem:[#allocation5 + $0x440] sm:$0xff]
    %v391 = vld [vmem:[#allocation5 + $0x448] sm:$0xff]
    %v392 = vld [vmem:[#allocation5 + $0x450] sm:$0xff]
    %v393 = vld [vmem:[#allocation5 + $0x458] sm:$0xff]
    %v394 = vld [vmem:[#allocation5 + $0x460] sm:$0xff]
    %v395 = vld [vmem:[#allocation5 + $0x468] sm:$0xff]
    %v396 = vld [vmem:[#allocation5 + $0x470] sm:$0xff]
    %v397 = vld [vmem:[#allocation5 + $0x478] sm:$0xff]
    %v398 = vld [vmem:[#allocation5 + $0x480] sm:$0xff]
    %v399 = vld [vmem:[#allocation5 + $0x488] sm:$0xff]
    %v400 = vld [vmem:[#allocation5 + $0x490] sm:$0xff]
    %v401 = vld [vmem:[#allocation5 + $0x498] sm:$0xff]
    %v402 = vld [vmem:[#allocation5 + $0x4a0] sm:$0xff]
    %v403 = vld [vmem:[#allocation5 + $0x4a8] sm:$0xff]
    %v404 = vld [vmem:[#allocation5 + $0x4b0] sm:$0xff]
    %v405 = vld [vmem:[#allocation5 + $0x4b8] sm:$0xff]
    %v406 = vld [vmem:[#allocation5 + $0x4c0] sm:$0xff]
    %v407 = vld [vmem:[#allocation5 + $0x4c8] sm:$0xff]
    %v408 = vld [vmem:[#allocation5 + $0x4d0] sm:$0xff]
    %v409 = vld [vmem:[#allocation5 + $0x4d8] sm:$0xff]
    %v410 = vld [vmem:[#allocation5 + $0x4e0] sm:$0xff]
    %v411 = vld [vmem:[#allocation5 + $0x4e8] sm:$0xff]
    %v412 = vld [vmem:[#allocation5 + $0x4f0] sm:$0xff]
    %v413 = vld [vmem:[#allocation5 + $0x4f8] sm:$0xff]
    %v414 = vld [vmem:[#allocation5 + $0x500] sm:$0xff]
    %v415 = vld [vmem:[#allocation5 + $0x508] sm:$0xff]
    %v416 = vld [vmem:[#allocation5 + $0x510] sm:$0xff]
    %v417 = vld [vmem:[#allocation5 + $0x518] sm:$0xff]
    %v418 = vld [vmem:[#allocation5 + $0x520] sm:$0xff]
    %v419 = vld [vmem:[#allocation5 + $0x528] sm:$0xff]
    %v420 = vld [vmem:[#allocation5 + $0x530] sm:$0xff]
    %v421 = vld [vmem:[#allocation5 + $0x538] sm:$0xff]
    %v422 = vld [vmem:[#allocation5 + $0x540] sm:$0xff]
    %v423 = vld [vmem:[#allocation5 + $0x548] sm:$0xff]
    %v424 = vld [vmem:[#allocation5 + $0x550] sm:$0xff]
    %v425 = vld [vmem:[#allocation5 + $0x558] sm:$0xff]
    %v426 = vld [vmem:[#allocation5 + $0x560] sm:$0xff]
    %v427 = vld [vmem:[#allocation5 + $0x568] sm:$0xff]
    %v428 = vld [vmem:[#allocation5 + $0x570] sm:$0xff]
    %v429 = vld [vmem:[#allocation5 + $0x578] sm:$0xff]
    %v430 = vld [vmem:[#allocation5 + $0x580] sm:$0xff]
    %v431 = vld [vmem:[#allocation5 + $0x588] sm:$0xff]
    %v432 = vld [vmem:[#allocation5 + $0x590] sm:$0xff]
    %v433 = vld [vmem:[#allocation5 + $0x598] sm:$0xff]
    %v434 = vld [vmem:[#allocation5 + $0x5a0] sm:$0xff]
    %v435 = vld [vmem:[#allocation5 + $0x5a8] sm:$0xff]
    %v436 = vld [vmem:[#allocation5 + $0x5b0] sm:$0xff]
    %v437 = vld [vmem:[#allocation5 + $0x5b8] sm:$0xff]
    %v438 = vld [vmem:[#allocation5 + $0x5c0] sm:$0xff]
    %v439 = vld [vmem:[#allocation5 + $0x5c8] sm:$0xff]
    %v440 = vld [vmem:[#allocation5 + $0x5d0] sm:$0xff]
    %v441 = vld [vmem:[#allocation5 + $0x5d8] sm:$0xff]
    %v442 = vld [vmem:[#allocation5 + $0x5e0] sm:$0xff]
    %v443 = vld [vmem:[#allocation5 + $0x5e8] sm:$0xff]
    %v444 = vld [vmem:[#allocation5 + $0x5f0] sm:$0xff]
    %v445 = vld [vmem:[#allocation5 + $0x5f8] sm:$0xff]
    %v446 = vld [vmem:[%s4] sm:$0x7]
    %v448 = vlaneseq
    %v449 = vshrl.u32 %v448, 7
    %v450 = vsub.s32 0, %v449
    %v451 = vrot.slane %v446, %v450
    %v452 = vlaneseq
    %v453 = vshrl.u32 %v452, 7
    %v454 = vsub.s32 1, %v453
    %v455 = vrot.slane %v446, %v454
    %v456 = vlaneseq
    %v457 = vshrl.u32 %v456, 7
    %v458 = vsub.s32 2, %v457
    %v459 = vrot.slane %v446, %v458
    %463 = vmatprep.subr.mxu0 %v300
    %464 = vmatpush1.msra.mxu0 %v299
    %465 = vmatprep.subr.mxu0 %v297
    %466 = vmatpush1.msra.mxu0 %v296
    %467 = vmatprep.subr.mxu0 %v294
    %468 = vmatpush1.msra.mxu0 %v293
    %469 = vmatprep.subr.mxu0 %v291
    %470 = vmatpush1.msra.mxu0 %v290
    %471 = vmatprep.subr.mxu0 %v288
    %472 = vmatpush1.msra.mxu0 %v287
    %473 = vmatprep.subr.mxu0 %v285
    %474 = vmatpush1.msra.mxu0 %v284
    %475 = vmatprep.subr.mxu0 %v282
    %476 = vmatpush1.msra.mxu0 %v281
    %477 = vmatprep.subr.mxu0 %v279
    %478 = vmatpush1.msra.mxu0 %v278
    %479 = vmatprep.subr.mxu0 %v276
    %480 = vmatpush1.msra.mxu0 %v275
    %481 = vmatprep.subr.mxu0 %v273
    %482 = vmatpush1.msra.mxu0 %v272
    %483 = vmatprep.subr.mxu0 %v270
    %484 = vmatpush1.msra.mxu0 %v269
    %485 = vmatprep.subr.mxu0 %v267
    %486 = vmatpush1.msra.mxu0 %v266
    %487 = vmatprep.subr.mxu0 %v264
    %488 = vmatpush1.msra.mxu0 %v263
    %489 = vmatprep.subr.mxu0 %v261
    %490 = vmatpush1.msra.mxu0 %v260
    %491 = vmatprep.subr.mxu0 %v258
    %492 = vmatpush1.msra.mxu0 %v257
    %493 = vmatprep.subr.mxu0 %v255
    %494 = vmatpush1.msra.mxu0 %v254
    %495 = vmatprep.subr.mxu0 %v348
    %496 = vmatpush2.msra.mxu0 %v347
    %497 = vmatprep.subr.mxu0 %v345
    %498 = vmatpush2.msra.mxu0 %v344
    %499 = vmatprep.subr.mxu0 %v342
    %500 = vmatpush2.msra.mxu0 %v341
    %501 = vmatprep.subr.mxu0 %v339
    %502 = vmatpush2.msra.mxu0 %v338
    %503 = vmatprep.subr.mxu0 %v336
    %504 = vmatpush2.msra.mxu0 %v335
    %505 = vmatprep.subr.mxu0 %v333
    %506 = vmatpush2.msra.mxu0 %v332
    %507 = vmatprep.subr.mxu0 %v330
    %508 = vmatpush2.msra.mxu0 %v329
    %509 = vmatprep.subr.mxu0 %v327
    %510 = vmatpush2.msra.mxu0 %v326
    %511 = vmatprep.subr.mxu0 %v324
    %512 = vmatpush2.msra.mxu0 %v323
    %513 = vmatprep.subr.mxu0 %v321
    %514 = vmatpush2.msra.mxu0 %v320
    %515 = vmatprep.subr.mxu0 %v318
    %516 = vmatpush2.msra.mxu0 %v317
    %517 = vmatprep.subr.mxu0 %v315
    %518 = vmatpush2.msra.mxu0 %v314
    %519 = vmatprep.subr.mxu0 %v312
    %520 = vmatpush2.msra.mxu0 %v311
    %521 = vmatprep.subr.mxu0 %v309
    %522 = vmatpush2.msra.mxu0 %v308
    %523 = vmatprep.subr.mxu0 %v306
    %524 = vmatpush2.msra.mxu0 %v305
    %525 = vmatprep.subr.mxu0 %v303
    %526 = vmatpush2.msra.mxu0 %v302
    %527 = vmatprep.mubr.f32.mxu0 %v251
    %528 = vmatmul.mubr.f32.gmra.mxu0 %v250
    %v529 = vpop.f32.mrf.mxu0
    %v530 = vadd.f32 %v451, %v529
    %v531 = vpop.f32.mrf.mxu0
    %v532 = vadd.f32 %v455, %v531
    %533 = vdwg.mxu0
    %534 = vmatprep.subr.mxu0 %v396
    %535 = vmatpush1.msra.mxu0 %v395
    %536 = vmatprep.subr.mxu0 %v393
    %537 = vmatpush1.msra.mxu0 %v392
    %538 = vmatprep.subr.mxu0 %v390
    %539 = vmatpush1.msra.mxu0 %v389
    %540 = vmatprep.subr.mxu0 %v387
    %541 = vmatpush1.msra.mxu0 %v386
    %542 = vmatprep.subr.mxu0 %v384
    %543 = vmatpush1.msra.mxu0 %v383
    %544 = vmatprep.subr.mxu0 %v381
    %545 = vmatpush1.msra.mxu0 %v380
    %546 = vmatprep.subr.mxu0 %v378
    %547 = vmatpush1.msra.mxu0 %v377
    %548 = vmatprep.subr.mxu0 %v375
    %549 = vmatpush1.msra.mxu0 %v374
    %550 = vmatprep.subr.mxu0 %v372
    %551 = vmatpush1.msra.mxu0 %v371
    %552 = vmatprep.subr.mxu0 %v369
    %553 = vmatpush1.msra.mxu0 %v368
    %554 = vmatprep.subr.mxu0 %v366
    %555 = vmatpush1.msra.mxu0 %v365
    %556 = vmatprep.subr.mxu0 %v363
    %557 = vmatpush1.msra.mxu0 %v362
    %558 = vmatprep.subr.mxu0 %v360
    %559 = vmatpush1.msra.mxu0 %v359
    %560 = vmatprep.subr.mxu0 %v357
    %561 = vmatpush1.msra.mxu0 %v356
    %562 = vmatprep.subr.mxu0 %v354
    %563 = vmatpush1.msra.mxu0 %v353
    %564 = vmatprep.subr.mxu0 %v351
    %565 = vmatpush1.msra.mxu0 %v350
    %566 = vmatprep.subr.mxu0 %v444
    %567 = vmatpush2.msra.mxu0 %v443
    %568 = vmatprep.subr.mxu0 %v441
    %569 = vmatpush2.msra.mxu0 %v440
    %570 = vmatprep.subr.mxu0 %v438
    %571 = vmatpush2.msra.mxu0 %v437
    %572 = vmatprep.subr.mxu0 %v435
    %573 = vmatpush2.msra.mxu0 %v434
    %574 = vmatprep.subr.mxu0 %v432
    %575 = vmatpush2.msra.mxu0 %v431
    %576 = vmatprep.subr.mxu0 %v429
    %577 = vmatpush2.msra.mxu0 %v428
    %578 = vmatprep.subr.mxu0 %v426
    %579 = vmatpush2.msra.mxu0 %v425
    %580 = vmatprep.subr.mxu0 %v423
    %581 = vmatpush2.msra.mxu0 %v422
    %582 = vmatprep.subr.mxu0 %v420
    %583 = vmatpush2.msra.mxu0 %v419
    %584 = vmatprep.subr.mxu0 %v417
    %585 = vmatpush2.msra.mxu0 %v416
    %586 = vmatprep.subr.mxu0 %v414
    %587 = vmatpush2.msra.mxu0 %v413
    %588 = vmatprep.subr.mxu0 %v411
    %589 = vmatpush2.msra.mxu0 %v410
    %590 = vmatprep.subr.mxu0 %v408
    %591 = vmatpush2.msra.mxu0 %v407
    %592 = vmatprep.subr.mxu0 %v405
    %593 = vmatpush2.msra.mxu0 %v404
    %594 = vmatprep.subr.mxu0 %v402
    %595 = vmatpush2.msra.mxu0 %v401
    %596 = vmatprep.subr.mxu0 %v399
    %597 = vmatpush2.msra.mxu0 %v398
    %598 = vmatprep.mubr.f32.mxu0 %v253
    %599 = vmatmul.mubr.f32.gmra.mxu0 %v252
    %v600 = vpop.f32.mrf.mxu0
    %v601 = vadd.f32 %v530, %v600
    %v602 = vpop.f32.mrf.mxu0
    %v603 = vadd.f32 %v532, %v602
    %604 = vdwg.mxu0
    %605 = vmatprep.subr.mxu0 0.0
    %606 = vmatpush1.msra.mxu0 %v301
    %607 = vmatprep.subr.mxu0 0.0
    %608 = vmatpush1.msra.mxu0 %v298
    %609 = vmatprep.subr.mxu0 0.0
    %610 = vmatpush1.msra.mxu0 %v295
    %611 = vmatprep.subr.mxu0 0.0
    %612 = vmatpush1.msra.mxu0 %v292
    %613 = vmatprep.subr.mxu0 0.0
    %614 = vmatpush1.msra.mxu0 %v289
    %615 = vmatprep.subr.mxu0 0.0
    %616 = vmatpush1.msra.mxu0 %v286
    %617 = vmatprep.subr.mxu0 0.0
    %618 = vmatpush1.msra.mxu0 %v283
    %619 = vmatprep.subr.mxu0 0.0
    %620 = vmatpush1.msra.mxu0 %v280
    %621 = vmatprep.subr.mxu0 0.0
    %622 = vmatpush1.msra.mxu0 %v277
    %623 = vmatprep.subr.mxu0 0.0
    %624 = vmatpush1.msra.mxu0 %v274
    %625 = vmatprep.subr.mxu0 0.0
    %626 = vmatpush1.msra.mxu0 %v271
    %627 = vmatprep.subr.mxu0 0.0
    %628 = vmatpush1.msra.mxu0 %v268
    %629 = vmatprep.subr.mxu0 0.0
    %630 = vmatpush1.msra.mxu0 %v265
    %631 = vmatprep.subr.mxu0 0.0
    %632 = vmatpush1.msra.mxu0 %v262
    %633 = vmatprep.subr.mxu0 0.0
    %634 = vmatpush1.msra.mxu0 %v259
    %635 = vmatprep.subr.mxu0 0.0
    %636 = vmatpush1.msra.mxu0 %v256
    %637 = vmatprep.subr.mxu0 0.0
    %638 = vmatpush2.msra.mxu0 %v349
    %639 = vmatprep.subr.mxu0 0.0
    %640 = vmatpush2.msra.mxu0 %v346
    %641 = vmatprep.subr.mxu0 0.0
    %642 = vmatpush2.msra.mxu0 %v343
    %643 = vmatprep.subr.mxu0 0.0
    %644 = vmatpush2.msra.mxu0 %v340
    %645 = vmatprep.subr.mxu0 0.0
    %646 = vmatpush2.msra.mxu0 %v337
    %647 = vmatprep.subr.mxu0 0.0
    %648 = vmatpush2.msra.mxu0 %v334
    %649 = vmatprep.subr.mxu0 0.0
    %650 = vmatpush2.msra.mxu0 %v331
    %651 = vmatprep.subr.mxu0 0.0
    %652 = vmatpush2.msra.mxu0 %v328
    %653 = vmatprep.subr.mxu0 0.0
    %654 = vmatpush2.msra.mxu0 %v325
    %655 = vmatprep.subr.mxu0 0.0
    %656 = vmatpush2.msra.mxu0 %v322
    %657 = vmatprep.subr.mxu0 0.0
    %658 = vmatpush2.msra.mxu0 %v319
    %659 = vmatprep.subr.mxu0 0.0
    %660 = vmatpush2.msra.mxu0 %v316
    %661 = vmatprep.subr.mxu0 0.0
    %662 = vmatpush2.msra.mxu0 %v313
    %663 = vmatprep.subr.mxu0 0.0
    %664 = vmatpush2.msra.mxu0 %v310
    %665 = vmatprep.subr.mxu0 0.0
    %666 = vmatpush2.msra.mxu0 %v307
    %667 = vmatprep.subr.mxu0 0.0
    %668 = vmatpush2.msra.mxu0 %v304
    %669 = vmatprep.mubr.f32.mxu0 %v251
    %670 = vmatmul.mubr.f32.gmra.mxu0 %v250
    %v671 = vpop.f32.mrf.mxu0
    %v672 = vadd.f32 %v459, %v671
    %v673 = vpop.f32.mrf.mxu0
    %674 = vdwg.mxu0
    %675 = vmatprep.subr.mxu0 0.0
    %676 = vmatpush1.msra.mxu0 %v397
    %677 = vmatprep.subr.mxu0 0.0
    %678 = vmatpush1.msra.mxu0 %v394
    %679 = vmatprep.subr.mxu0 0.0
    %680 = vmatpush1.msra.mxu0 %v391
    %681 = vmatprep.subr.mxu0 0.0
    %682 = vmatpush1.msra.mxu0 %v388
    %683 = vmatprep.subr.mxu0 0.0
    %684 = vmatpush1.msra.mxu0 %v385
    %685 = vmatprep.subr.mxu0 0.0
    %686 = vmatpush1.msra.mxu0 %v382
    %687 = vmatprep.subr.mxu0 0.0
    %688 = vmatpush1.msra.mxu0 %v379
    %689 = vmatprep.subr.mxu0 0.0
    %690 = vmatpush1.msra.mxu0 %v376
    %691 = vmatprep.subr.mxu0 0.0
    %692 = vmatpush1.msra.mxu0 %v373
    %693 = vmatprep.subr.mxu0 0.0
    %694 = vmatpush1.msra.mxu0 %v370
    %695 = vmatprep.subr.mxu0 0.0
    %696 = vmatpush1.msra.mxu0 %v367
    %697 = vmatprep.subr.mxu0 0.0
    %698 = vmatpush1.msra.mxu0 %v364
    %699 = vmatprep.subr.mxu0 0.0
    %700 = vmatpush1.msra.mxu0 %v361
    %701 = vmatprep.subr.mxu0 0.0
    %702 = vmatpush1.msra.mxu0 %v358
    %703 = vmatprep.subr.mxu0 0.0
    %704 = vmatpush1.msra.mxu0 %v355
    %705 = vmatprep.subr.mxu0 0.0
    %706 = vmatpush1.msra.mxu0 %v352
    %707 = vmatprep.subr.mxu0 0.0
    %708 = vmatpush2.msra.mxu0 %v445
    %709 = vmatprep.subr.mxu0 0.0
    %710 = vmatpush2.msra.mxu0 %v442
    %711 = vmatprep.subr.mxu0 0.0
    %712 = vmatpush2.msra.mxu0 %v439
    %713 = vmatprep.subr.mxu0 0.0
    %714 = vmatpush2.msra.mxu0 %v436
    %715 = vmatprep.subr.mxu0 0.0
    %716 = vmatpush2.msra.mxu0 %v433
    %717 = vmatprep.subr.mxu0 0.0
    %718 = vmatpush2.msra.mxu0 %v430
    %719 = vmatprep.subr.mxu0 0.0
    %720 = vmatpush2.msra.mxu0 %v427
    %721 = vmatprep.subr.mxu0 0.0
    %722 = vmatpush2.msra.mxu0 %v424
    %723 = vmatprep.subr.mxu0 0.0
    %724 = vmatpush2.msra.mxu0 %v421
    %725 = vmatprep.subr.mxu0 0.0
    %726 = vmatpush2.msra.mxu0 %v418
    %727 = vmatprep.subr.mxu0 0.0
    %728 = vmatpush2.msra.mxu0 %v415
    %729 = vmatprep.subr.mxu0 0.0
    %730 = vmatpush2.msra.mxu0 %v412
    %731 = vmatprep.subr.mxu0 0.0
    %732 = vmatpush2.msra.mxu0 %v409
    %733 = vmatprep.subr.mxu0 0.0
    %734 = vmatpush2.msra.mxu0 %v406
    %735 = vmatprep.subr.mxu0 0.0
    %736 = vmatpush2.msra.mxu0 %v403
    %737 = vmatprep.subr.mxu0 0.0
    %738 = vmatpush2.msra.mxu0 %v400
    %739 = vmatprep.mubr.f32.mxu0 %v253
    %740 = vmatmul.mubr.f32.gmra.mxu0 %v252
    %v741 = vpop.f32.mrf.mxu0
    %v742 = vadd.f32 %v672, %v741
    %v743 = vpop.f32.mrf.mxu0
    %744 = vdwg.mxu0
    %v745 = vmax.f32 %v601, 0.0
    %v746 = vmax.f32 %v603, 0.0
    %v747 = vmax.f32 %v742, 0.0
    %v748 = vld [vmem:[#allocation7] sm:$0xff]
    %v749 = vld [vmem:[#allocation7 + $0x8] sm:$0xff]
    %v750 = vld [vmem:[#allocation7 + $0x10] sm:$0xff]
    %v751 = vld [vmem:[#allocation7 + $0x18] sm:$0xff]
    %v752 = vld [vmem:[#allocation7 + $0x20] sm:$0xff]
    %v753 = vld [vmem:[#allocation7 + $0x28] sm:$0xff]
    %v754 = vld [vmem:[#allocation7 + $0x30] sm:$0xff]
    %v755 = vld [vmem:[#allocation7 + $0x38] sm:$0xff]
    %v756 = vld [vmem:[#allocation7 + $0x40] sm:$0xff]
    %v757 = vld [vmem:[#allocation7 + $0x48] sm:$0xff]
    %v758 = vld [vmem:[#allocation7 + $0x50] sm:$0xff]
    %v759 = vld [vmem:[#allocation7 + $0x58] sm:$0xff]
    %v760 = vld [vmem:[#allocation7 + $0x60] sm:$0xff]
    %v761 = vld [vmem:[#allocation7 + $0x68] sm:$0xff]
    %v762 = vld [vmem:[#allocation7 + $0x70] sm:$0xff]
    %v763 = vld [vmem:[#allocation7 + $0x78] sm:$0xff]
    %v764 = vld [vmem:[#allocation7 + $0x80] sm:$0xff]
    %v765 = vld [vmem:[#allocation7 + $0x88] sm:$0xff]
    %v766 = vld [vmem:[#allocation7 + $0x90] sm:$0xff]
    %v767 = vld [vmem:[#allocation7 + $0x98] sm:$0xff]
    %v768 = vld [vmem:[#allocation7 + $0xa0] sm:$0xff]
    %v769 = vld [vmem:[#allocation7 + $0xa8] sm:$0xff]
    %v770 = vld [vmem:[#allocation7 + $0xb0] sm:$0xff]
    %v771 = vld [vmem:[#allocation7 + $0xb8] sm:$0xff]
    %v772 = vld [vmem:[#allocation7 + $0xc0] sm:$0xff]
    %v773 = vld [vmem:[#allocation7 + $0xc8] sm:$0xff]
    %v774 = vld [vmem:[#allocation7 + $0xd0] sm:$0xff]
    %v775 = vld [vmem:[#allocation7 + $0xd8] sm:$0xff]
    %v776 = vld [vmem:[#allocation7 + $0xe0] sm:$0xff]
    %v777 = vld [vmem:[#allocation7 + $0xe8] sm:$0xff]
    %v778 = vld [vmem:[#allocation7 + $0xf0] sm:$0xff]
    %v779 = vld [vmem:[#allocation7 + $0xf8] sm:$0xff]
    %v780 = vld [vmem:[#allocation7 + $0x100] sm:$0xff]
    %v781 = vld [vmem:[#allocation7 + $0x108] sm:$0xff]
    %v782 = vld [vmem:[#allocation7 + $0x110] sm:$0xff]
    %v783 = vld [vmem:[#allocation7 + $0x118] sm:$0xff]
    %v784 = vld [vmem:[#allocation7 + $0x120] sm:$0xff]
    %v785 = vld [vmem:[#allocation7 + $0x128] sm:$0xff]
    %v786 = vld [vmem:[#allocation7 + $0x130] sm:$0xff]
    %v787 = vld [vmem:[#allocation7 + $0x138] sm:$0xff]
    %v788 = vld [vmem:[#allocation7 + $0x140] sm:$0xff]
    %v789 = vld [vmem:[#allocation7 + $0x148] sm:$0xff]
    %v790 = vld [vmem:[#allocation7 + $0x150] sm:$0xff]
    %v791 = vld [vmem:[#allocation7 + $0x158] sm:$0xff]
    %v792 = vld [vmem:[#allocation7 + $0x160] sm:$0xff]
    %v793 = vld [vmem:[#allocation7 + $0x168] sm:$0xff]
    %v794 = vld [vmem:[#allocation7 + $0x170] sm:$0xff]
    %v795 = vld [vmem:[#allocation7 + $0x178] sm:$0xff]
    %v796 = vld [vmem:[%s6] sm:$0x1]
    %v798 = vlaneseq
    %v799 = vshrl.u32 %v798, 7
    %v800 = vsub.s32 0, %v799
    %v801 = vrot.slane %v796, %v800
    %803 = vmatprep.subr.mxu0 0.0
    %804 = vmatpush1.msra.mxu0 %v763
    %805 = vmatprep.subr.mxu0 0.0
    %806 = vmatpush1.msra.mxu0 %v762
    %807 = vmatprep.subr.mxu0 0.0
    %808 = vmatpush1.msra.mxu0 %v761
    %809 = vmatprep.subr.mxu0 0.0
    %810 = vmatpush1.msra.mxu0 %v760
    %811 = vmatprep.subr.mxu0 0.0
    %812 = vmatpush1.msra.mxu0 %v759
    %813 = vmatprep.subr.mxu0 0.0
    %814 = vmatpush1.msra.mxu0 %v758
    %815 = vmatprep.subr.mxu0 0.0
    %816 = vmatpush1.msra.mxu0 %v757
    %817 = vmatprep.subr.mxu0 0.0
    %818 = vmatpush1.msra.mxu0 %v756
    %819 = vmatprep.subr.mxu0 0.0
    %820 = vmatpush1.msra.mxu0 %v755
    %821 = vmatprep.subr.mxu0 0.0
    %822 = vmatpush1.msra.mxu0 %v754
    %823 = vmatprep.subr.mxu0 0.0
    %824 = vmatpush1.msra.mxu0 %v753
    %825 = vmatprep.subr.mxu0 0.0
    %826 = vmatpush1.msra.mxu0 %v752
    %827 = vmatprep.subr.mxu0 0.0
    %828 = vmatpush1.msra.mxu0 %v751
    %829 = vmatprep.subr.mxu0 0.0
    %830 = vmatpush1.msra.mxu0 %v750
    %831 = vmatprep.subr.mxu0 0.0
    %832 = vmatpush1.msra.mxu0 %v749
    %833 = vmatprep.subr.mxu0 0.0
    %834 = vmatpush1.msra.mxu0 %v748
    %835 = vmatprep.subr.mxu0 0.0
    %836 = vmatpush2.msra.mxu0 %v779
    %837 = vmatprep.subr.mxu0 0.0
    %838 = vmatpush2.msra.mxu0 %v778
    %839 = vmatprep.subr.mxu0 0.0
    %840 = vmatpush2.msra.mxu0 %v777
    %841 = vmatprep.subr.mxu0 0.0
    %842 = vmatpush2.msra.mxu0 %v776
    %843 = vmatprep.subr.mxu0 0.0
    %844 = vmatpush2.msra.mxu0 %v775
    %845 = vmatprep.subr.mxu0 0.0
    %846 = vmatpush2.msra.mxu0 %v774
    %847 = vmatprep.subr.mxu0 0.0
    %848 = vmatpush2.msra.mxu0 %v773
    %849 = vmatprep.subr.mxu0 0.0
    %850 = vmatpush2.msra.mxu0 %v772
    %851 = vmatprep.subr.mxu0 0.0
    %852 = vmatpush2.msra.mxu0 %v771
    %853 = vmatprep.subr.mxu0 0.0
    %854 = vmatpush2.msra.mxu0 %v770
    %855 = vmatprep.subr.mxu0 0.0
    %856 = vmatpush2.msra.mxu0 %v769
    %857 = vmatprep.subr.mxu0 0.0
    %858 = vmatpush2.msra.mxu0 %v768
    %859 = vmatprep.subr.mxu0 0.0
    %860 = vmatpush2.msra.mxu0 %v767
    %861 = vmatprep.subr.mxu0 0.0
    %862 = vmatpush2.msra.mxu0 %v766
    %863 = vmatprep.subr.mxu0 0.0
    %864 = vmatpush2.msra.mxu0 %v765
    %865 = vmatprep.subr.mxu0 0.0
    %866 = vmatpush2.msra.mxu0 %v764
    %867 = vmatprep.mubr.f32.mxu0 %v746
    %868 = vmatmul.mubr.f32.gmra.mxu0 %v745
    %v869 = vpop.f32.mrf.mxu0
    %v870 = vadd.f32 %v801, %v869
    %v871 = vpop.f32.mrf.mxu0
    %872 = vdwg.mxu0
    %873 = vmatprep.subr.mxu0 0.0
    %874 = vmatpush1.msra.mxu0 %v795
    %875 = vmatprep.subr.mxu0 0.0
    %876 = vmatpush1.msra.mxu0 %v794
    %877 = vmatprep.subr.mxu0 0.0
    %878 = vmatpush1.msra.mxu0 %v793
    %879 = vmatprep.subr.mxu0 0.0
    %880 = vmatpush1.msra.mxu0 %v792
    %881 = vmatprep.subr.mxu0 0.0
    %882 = vmatpush1.msra.mxu0 %v791
    %883 = vmatprep.subr.mxu0 0.0
    %884 = vmatpush1.msra.mxu0 %v790
    %885 = vmatprep.subr.mxu0 0.0
    %886 = vmatpush1.msra.mxu0 %v789
    %887 = vmatprep.subr.mxu0 0.0
    %888 = vmatpush1.msra.mxu0 %v788
    %889 = vmatprep.subr.mxu0 0.0
    %890 = vmatpush1.msra.mxu0 %v787
    %891 = vmatprep.subr.mxu0 0.0
    %892 = vmatpush1.msra.mxu0 %v786
    %893 = vmatprep.subr.mxu0 0.0
    %894 = vmatpush1.msra.mxu0 %v785
    %895 = vmatprep.subr.mxu0 0.0
    %896 = vmatpush1.msra.mxu0 %v784
    %897 = vmatprep.subr.mxu0 0.0
    %898 = vmatpush1.msra.mxu0 %v783
    %899 = vmatprep.subr.mxu0 0.0
    %900 = vmatpush1.msra.mxu0 %v782
    %901 = vmatprep.subr.mxu0 0.0
    %902 = vmatpush1.msra.mxu0 %v781
    %903 = vmatprep.subr.mxu0 0.0
    %904 = vmatpush1.msra.mxu0 %v780
    %905 = vmatprep.subr.mxu0 0.0
    %906 = vmatpush2.msra.mxu0 0.0
    %907 = vmatprep.subr.mxu0 0.0
    %908 = vmatpush2.msra.mxu0 0.0
    %909 = vmatprep.subr.mxu0 0.0
    %910 = vmatpush2.msra.mxu0 0.0
    %911 = vmatprep.subr.mxu0 0.0
    %912 = vmatpush2.msra.mxu0 0.0
    %913 = vmatprep.subr.mxu0 0.0
    %914 = vmatpush2.msra.mxu0 0.0
    %915 = vmatprep.subr.mxu0 0.0
    %916 = vmatpush2.msra.mxu0 0.0
    %917 = vmatprep.subr.mxu0 0.0
    %918 = vmatpush2.msra.mxu0 0.0
    %919 = vmatprep.subr.mxu0 0.0
    %920 = vmatpush2.msra.mxu0 0.0
    %921 = vmatprep.subr.mxu0 0.0
    %922 = vmatpush2.msra.mxu0 0.0
    %923 = vmatprep.subr.mxu0 0.0
    %924 = vmatpush2.msra.mxu0 0.0
    %925 = vmatprep.subr.mxu0 0.0
    %926 = vmatpush2.msra.mxu0 0.0
    %927 = vmatprep.subr.mxu0 0.0
    %928 = vmatpush2.msra.mxu0 0.0
    %929 = vmatprep.subr.mxu0 0.0
    %930 = vmatpush2.msra.mxu0 0.0
    %931 = vmatprep.subr.mxu0 0.0
    %932 = vmatpush2.msra.mxu0 0.0
    %933 = vmatprep.subr.mxu0 0.0
    %934 = vmatpush2.msra.mxu0 0.0
    %935 = vmatprep.subr.mxu0 0.0
    %936 = vmatpush2.msra.mxu0 0.0
    %937 = vmatprep.mubr.f32.mxu0 0.0
    %938 = vmatmul.mubr.f32.gmra.mxu0 %v747
    %v939 = vpop.f32.mrf.mxu0
    %v940 = vadd.f32 %v870, %v939
    %v941 = vpop.f32.mrf.mxu0
    %942 = vdwg.mxu0
    %v943 = vtanh.pop %v940
    %944 = vst [vmem:[#allocation8] sm:$0xff] %v943
    // Predicated region
    $region42: #{tpu_custom_call.1} parent=1 // pred_check
      _
    $region43: #{tpu_custom_call.1} parent=1 // pred_check_branch
      %946 = sbr.rel (0) target = $region45
    $region44: #{tpu_custom_call.1} parent=1 // pred_region
      %s948 = ssub.s32 128, 128
      %949 = vsyncadd [#allocation4], %s948
      %s951 = sshll.u32 [#allocation8], 4
      %s952 = int_to_ptr.vmem [resolvable:$true] %s951
      %954 = dma.vmem_to_hbm [thread:$0]  %s952, 128, %s7, [#allocation4]
    $region45: #{tpu_custom_call.1} parent=1 // pred_fallthru
      _
    // Predicated region
    $region46: #{tpu_custom_call.1} parent=1 // pred_check
      _
    $region47: #{tpu_custom_call.1} parent=1 // pred_check_branch
      %956 = sbr.rel (0) target = $region49
    $region48: #{tpu_custom_call.1} parent=1 // pred_region
      %957 = dma.done [#allocation4], 128
    $region49: #{tpu_custom_call.1} parent=1 // pred_fallthru
      _
    %958 = vsyncpa [#allocation3], 1
    %959 = vsyncpa [#allocation6], 1
    %960 = vsyncpa [#allocation4], 1

</llo_original>
